<compile_context>
chip_gen: v6e
topology: v6e:2x2x1
jax: 0.10.0
libtpu: 0.0.40
codegen_flags: <defaults>
</compile_context>

<pallas_src>
import functools

import jax
import jax.numpy as jnp
from jax.experimental import pallas as pl
from jax.experimental.pallas import tpu as pltpu


def _controller_kernel(x_ref, wx_ref, b1_ref, w2_ref, b2_ref, v_ref, u_ref, *,
                       n_hidden):
    x = x_ref[...]                                            # (TB, n_in)
    # Fused x-driven matmul: x @ [W1^T | Wc^T] -> (TB, n_hidden + n_out)
    xw = jnp.dot(x, wx_ref[...], preferred_element_type=jnp.float32)
    h1 = jnp.tanh(xw[:, :n_hidden] + b1_ref[...])             # (TB, n_hidden)
    u_ref[...] = xw[:, n_hidden:].astype(u_ref.dtype)         # (TB, n_out)
    v = jnp.tanh(
        jnp.dot(h1, w2_ref[...], preferred_element_type=jnp.float32)
        + b2_ref[...])                                        # (TB, n_out)
    v_ref[...] = v.astype(v_ref.dtype)


def prepare_params(w1, b1, w2, b2, wc):
    """One-time parameter repack (call once at load time, not per step).

    Args (PyTorch layouts):
      w1: (n_hidden, n_input), b1: (n_hidden,)
      w2: (n_output, n_hidden), b2: (n_output,)
      wc: (n_output, n_input)
    Returns:
      (wx, b1_2d, w2_t, b2_2d) in kernel-friendly (in, out) layouts.
    """
    n_hidden = w1.shape[0]
    n_out = w2.shape[0]
    wx = jnp.concatenate(
        [jnp.asarray(w1, jnp.float32).T, jnp.asarray(wc, jnp.float32).T],
        axis=1)                                               # (n_in, n_hidden+n_out)
    w2_t = jnp.asarray(w2, jnp.float32).T                     # (n_hidden, n_out)
    b1_2d = jnp.asarray(b1, jnp.float32).reshape(1, n_hidden)
    b2_2d = jnp.asarray(b2, jnp.float32).reshape(1, n_out)
    return wx, b1_2d, w2_t, b2_2d


def _pick_batch_tile(B, n_in, n_out):
    """Largest useful batch tile: multiple of 8, ~4 MiB of batch-tiled f32."""
    row_bytes = 4 * (n_in + 2 * n_out)                 # x row + both out rows
    cap = ((4 * 1024 * 1024) // row_bytes) // 8 * 8
    cap = max(1024, min(cap, 32768))
    return B if B <= cap else cap


@jax.jit
def neural_lyapunov_controller(x, wx, b1_2d, w2_t, b2_2d):
    """Pallas forward pass. Returns (V, u)."""
    B, n_in = x.shape
    n_hidden, n_out = w2_t.shape
    n_cat = n_hidden + n_out

    tb = _pick_batch_tile(B, n_in, n_out)
    grid = (pl.cdiv(B, tb),)

    kernel = functools.partial(_controller_kernel, n_hidden=n_hidden)

    cost = pl.CostEstimate(
        flops=2 * B * (n_in * n_cat + n_hidden * n_out),
        transcendentals=B * (n_hidden + n_out),
        bytes_accessed=4 * (B * n_in + n_in * n_cat + n_hidden
                            + n_hidden * n_out + n_out + 2 * B * n_out),
    )

    v, u = pl.pallas_call(
        kernel,
        out_shape=(jax.ShapeDtypeStruct((B, n_out), jnp.float32),
                   jax.ShapeDtypeStruct((B, n_out), jnp.float32)),
        grid_spec=pltpu.PrefetchScalarGridSpec(
            num_scalar_prefetch=0,
            grid=grid,
            in_specs=[
                pl.BlockSpec((tb, n_in), lambda i: (i, 0)),        # x tile
                pl.BlockSpec((n_in, n_cat), lambda i: (0, 0)),     # [W1^T|Wc^T]
                pl.BlockSpec((1, n_hidden), lambda i: (0, 0)),     # b1
                pl.BlockSpec((n_hidden, n_out), lambda i: (0, 0)), # W2^T
                pl.BlockSpec((1, n_out), lambda i: (0, 0)),        # b2
            ],
            out_specs=[
                pl.BlockSpec((tb, n_out), lambda i: (i, 0)),       # V
                pl.BlockSpec((tb, n_out), lambda i: (i, 0)),       # u
            ],
        ),
        compiler_params=pltpu.CompilerParams(
            dimension_semantics=("parallel",)),
        cost_estimate=cost,
    )(x.astype(jnp.float32), wx, b1_2d, w2_t, b2_2d)

    return v, u


def _reference(x, w1, b1, w2, b2, wc):
    h1 = jnp.tanh(x @ w1.T + b1)
    v = jnp.tanh(h1 @ w2.T + b2)
    u = x @ wc.T
    return v, u


if __name__ == "__main__":
    # Small, deterministic example shapes consistent with the module.
    batch = 8
    n_input, n_hidden, n_output = 4, 32, 2

    key = jax.random.PRNGKey(0)
    kx, k1, kb1, k2, kb2, kc = jax.random.split(key, 6)

    # PyTorch-Linear-style init: U(-1/sqrt(fan_in), 1/sqrt(fan_in)).
    lim1 = 1.0 / jnp.sqrt(n_input)
    lim2 = 1.0 / jnp.sqrt(n_hidden)
    x = jax.random.normal(kx, (batch, n_input), jnp.float32)
    w1 = jax.random.uniform(k1, (n_hidden, n_input), jnp.float32, -lim1, lim1)
    b1 = jax.random.uniform(kb1, (n_hidden,), jnp.float32, -lim1, lim1)
    w2 = jax.random.uniform(k2, (n_output, n_hidden), jnp.float32, -lim2, lim2)
    b2 = jax.random.uniform(kb2, (n_output,), jnp.float32, -lim2, lim2)
    wc = jax.random.uniform(kc, (n_output, n_input), jnp.float32, -lim1, lim1)

    # One-time parameter repack (outside the per-call path).
    params = prepare_params(w1, b1, w2, b2, wc)

    v, u = neural_lyapunov_controller(x, *params)
    jax.block_until_ready((v, u))

    v_ref, u_ref = _reference(x, w1, b1, w2, b2, wc)
    assert v.shape == (batch, n_output) and u.shape == (batch, n_output)
    assert jnp.allclose(v, v_ref, atol=1e-5, rtol=1e-5)
    assert jnp.allclose(u, u_ref, atol=1e-5, rtol=1e-5)

    print("KERNEL_OK")
</pallas_src>

<mosaic_0001>
module attributes {stable_mosaic.version = 11 : i64} {
  func.func @_controller_kernel(%arg0: i32, %arg1: memref<8x4xf32, #tpu.memory_space<vmem>>, %arg2: memref<4x34xf32, #tpu.memory_space<vmem>>, %arg3: memref<1x32xf32, #tpu.memory_space<vmem>>, %arg4: memref<32x2xf32, #tpu.memory_space<vmem>>, %arg5: memref<1x2xf32, #tpu.memory_space<vmem>>, %arg6: memref<8x2xf32, #tpu.memory_space<vmem>>, %arg7: memref<8x2xf32, #tpu.memory_space<vmem>>) attributes {dimension_semantics = [#tpu.dimension_semantics<parallel>], iteration_bounds = array<i64: 1>, scalar_prefetch = 0 : i64, scratch_operands = 0 : i64, tpu.core_type = #tpu.core_type<tc>, window_params = [{transform_indices = @transform_0, window_bounds = array<i64: 8, 4>}, {pipeline_mode = #tpu.pipeline_mode<synchronous>, transform_indices = @transform_1, window_bounds = array<i64: 4, 34>}, {pipeline_mode = #tpu.pipeline_mode<synchronous>, transform_indices = @transform_2, window_bounds = array<i64: 1, 32>}, {pipeline_mode = #tpu.pipeline_mode<synchronous>, transform_indices = @transform_3, window_bounds = array<i64: 32, 2>}, {pipeline_mode = #tpu.pipeline_mode<synchronous>, transform_indices = @transform_4, window_bounds = array<i64: 1, 2>}, {transform_indices = @transform_5, window_bounds = array<i64: 8, 2>}, {transform_indices = @transform_6, window_bounds = array<i64: 8, 2>}]} {
    %c0 = arith.constant 0 : index
    %c0_0 = arith.constant 0 : index
    %0 = vector.load %arg1[%c0, %c0_0] : memref<8x4xf32, #tpu.memory_space<vmem>>, vector<8x4xf32>
    %c0_1 = arith.constant 0 : index
    %c0_2 = arith.constant 0 : index
    %1 = vector.load %arg2[%c0_1, %c0_2] : memref<4x34xf32, #tpu.memory_space<vmem>>, vector<4x34xf32>
    %cst = arith.constant dense<0.000000e+00> : vector<8x34xf32>
    %2 = tpu.matmul %0, %1, %cst {dimension_numbers = #tpu.dot_dimension_numbers<[1], [0], [0], [1], [0, 0, 1, 1], [], []>} : vector<8x4xf32>, vector<4x34xf32>, vector<8x34xf32> -> vector<8x34xf32>
    %3 = vector.extract_strided_slice %2 {offsets = [0, 0], sizes = [8, 32], strides = [1, 1]} : vector<8x34xf32> to vector<8x32xf32>
    %c0_3 = arith.constant 0 : index
    %c0_4 = arith.constant 0 : index
    %4 = vector.load %arg3[%c0_3, %c0_4] : memref<1x32xf32, #tpu.memory_space<vmem>>, vector<1x32xf32>
    %5 = vector.broadcast %4 : vector<1x32xf32> to vector<8x32xf32>
    %6 = arith.addf %3, %5 : vector<8x32xf32>
    %7 = math.tanh %6 : vector<8x32xf32>
    %8 = vector.extract_strided_slice %2 {offsets = [0, 32], sizes = [8, 2], strides = [1, 1]} : vector<8x34xf32> to vector<8x2xf32>
    %c0_5 = arith.constant 0 : index
    %c0_6 = arith.constant 0 : index
    %9 = vector.load %arg7[%c0_5, %c0_6] : memref<8x2xf32, #tpu.memory_space<vmem>>, vector<8x2xf32>
    tpu.vector_store %arg7[%c0_5, %c0_6], %8 {strides = array<i32>} : memref<8x2xf32, #tpu.memory_space<vmem>>, vector<8x2xf32>,
    %c0_7 = arith.constant 0 : index
    %c0_8 = arith.constant 0 : index
    %10 = vector.load %arg4[%c0_7, %c0_8] : memref<32x2xf32, #tpu.memory_space<vmem>>, vector<32x2xf32>
    %cst_9 = arith.constant dense<0.000000e+00> : vector<8x2xf32>
    %11 = tpu.matmul %7, %10, %cst_9 {dimension_numbers = #tpu.dot_dimension_numbers<[1], [0], [0], [1], [0, 0, 1, 1], [], []>} : vector<8x32xf32>, vector<32x2xf32>, vector<8x2xf32> -> vector<8x2xf32>
    %c0_10 = arith.constant 0 : index
    %c0_11 = arith.constant 0 : index
    %12 = vector.load %arg5[%c0_10, %c0_11] : memref<1x2xf32, #tpu.memory_space<vmem>>, vector<1x2xf32>
    %13 = vector.broadcast %12 : vector<1x2xf32> to vector<8x2xf32>
    %14 = arith.addf %11, %13 : vector<8x2xf32>
    %15 = math.tanh %14 : vector<8x2xf32>
    %c0_12 = arith.constant 0 : index
    %c0_13 = arith.constant 0 : index
    %16 = vector.load %arg6[%c0_12, %c0_13] : memref<8x2xf32, #tpu.memory_space<vmem>>, vector<8x2xf32>
    tpu.vector_store %arg6[%c0_12, %c0_13], %15 {strides = array<i32>} : memref<8x2xf32, #tpu.memory_space<vmem>>, vector<8x2xf32>,
    return
  }
  func.func @transform_0(%arg0: i32) -> (i32, i32) {
    %c0_i32 = arith.constant 0 : i32
    %c0_i32_0 = arith.constant 0 : i32
    return %arg0, %c0_i32 : i32, i32
  }
  func.func @transform_1(%arg0: i32) -> (i32, i32) {
    %c0_i32 = arith.constant 0 : i32
    %c0_i32_0 = arith.constant 0 : i32
    %c0_i32_1 = arith.constant 0 : i32
    return %c0_i32, %c0_i32_0 : i32, i32
  }
  func.func @transform_2(%arg0: i32) -> (i32, i32) {
    %c0_i32 = arith.constant 0 : i32
    %c0_i32_0 = arith.constant 0 : i32
    %c0_i32_1 = arith.constant 0 : i32
    return %c0_i32, %c0_i32_0 : i32, i32
  }
  func.func @transform_3(%arg0: i32) -> (i32, i32) {
    %c0_i32 = arith.constant 0 : i32
    %c0_i32_0 = arith.constant 0 : i32
    %c0_i32_1 = arith.constant 0 : i32
    return %c0_i32, %c0_i32_0 : i32, i32
  }
  func.func @transform_4(%arg0: i32) -> (i32, i32) {
    %c0_i32 = arith.constant 0 : i32
    %c0_i32_0 = arith.constant 0 : i32
    %c0_i32_1 = arith.constant 0 : i32
    return %c0_i32, %c0_i32_0 : i32, i32
  }
  func.func @transform_5(%arg0: i32) -> (i32, i32) {
    %c0_i32 = arith.constant 0 : i32
    %c0_i32_0 = arith.constant 0 : i32
    return %arg0, %c0_i32 : i32, i32
  }
  func.func @transform_6(%arg0: i32) -> (i32, i32) {
    %c0_i32 = arith.constant 0 : i32
    %c0_i32_0 = arith.constant 0 : i32
    return %arg0, %c0_i32 : i32, i32
  }
}

</mosaic_0001>

<llo_original>
// kernel: neural_lyapunov_controller.1
$region0: #{neural_lyapunov_controller.1}
  #allocation0 [shape = 'u32[]', space=smem, size = 0x4, offset = 0x4, fixed_abs, tag = 'smem constant byte address 0x4 - core index']
  #allocation1 [shape = 'u32[144,128]{1,0:T(1,128)}', space=vmem, size = 0x12000, scoped, tag = 'internal scratch']
  %s0 = inlined_call_operand.vmem [shape: f32[8,4], index: 0, kind: input, shape index: {}]
  %s1 = inlined_call_operand.vmem [shape: f32[4,34], index: 1, kind: input, shape index: {}]
  %s2 = inlined_call_operand.vmem [shape: f32[1,32], index: 2, kind: input, shape index: {}]
  %s3 = inlined_call_operand.vmem [shape: f32[32,2], index: 3, kind: input, shape index: {}]
  %s4 = inlined_call_operand.vmem [shape: f32[1,2], index: 4, kind: input, shape index: {}]
  %s5 = inlined_call_operand.vmem [shape: f32[8,2], index: 5, kind: output, shape index: {0}]
  %s6 = inlined_call_operand.vmem [shape: f32[8,2], index: 6, kind: output, shape index: {1}]
  %7 = xla_tuple %s5, %s6
  %s8 = sld [smem:[#allocation0]]
  $region38: #{neural_lyapunov_controller.1} parent=0
    _
  %s10 = ssub.s32 1, %s8
  %s11 = scalar_select 0, %s10, %s8
  // Predicated region
  $region2: #{neural_lyapunov_controller.1} parent=0 // pred_check
    _
  $region3: #{neural_lyapunov_controller.1} parent=0 // pred_check_branch
    %13 = sbr.rel (0) target = $region5
  $region4: #{neural_lyapunov_controller.1} parent=0 // pred_region
    _
  $region5: #{neural_lyapunov_controller.1} parent=0 // pred_fallthru
    _
  // Predicated region
  $region6: #{neural_lyapunov_controller.1} parent=0 // pred_check
    _
  $region7: #{neural_lyapunov_controller.1} parent=0 // pred_check_branch
    %15 = sbr.rel (0) target = $region9
  $region8: #{neural_lyapunov_controller.1} parent=0 // pred_region
    _
  $region9: #{neural_lyapunov_controller.1} parent=0 // pred_fallthru
    _
  // Predicated region
  $region10: #{neural_lyapunov_controller.1} parent=0 // pred_check
    _
  $region11: #{neural_lyapunov_controller.1} parent=0 // pred_check_branch
    %17 = sbr.rel (0) target = $region13
  $region12: #{neural_lyapunov_controller.1} parent=0 // pred_region
    _
  $region13: #{neural_lyapunov_controller.1} parent=0 // pred_fallthru
    _
  // Predicated region
  $region14: #{neural_lyapunov_controller.1} parent=0 // pred_check
    _
  $region15: #{neural_lyapunov_controller.1} parent=0 // pred_check_branch
    %19 = sbr.rel (0) target = $region17
  $region16: #{neural_lyapunov_controller.1} parent=0 // pred_region
    _
  $region17: #{neural_lyapunov_controller.1} parent=0 // pred_fallthru
    _
  // Predicated region
  $region18: #{neural_lyapunov_controller.1} parent=0 // pred_check
    _
  $region19: #{neural_lyapunov_controller.1} parent=0 // pred_check_branch
    %21 = sbr.rel (0) target = $region21
  $region20: #{neural_lyapunov_controller.1} parent=0 // pred_region
    _
  $region21: #{neural_lyapunov_controller.1} parent=0 // pred_fallthru
    _
  %v22 = vld [vmem:[%s0] sm:$0xff]
  %v23 = vld [vmem:[%s1] sm:$0xf]
  %vm24 = vcmask 31744
  %v26 = vsel %vm24, %v22, 0
  %vm28 = vcmask 1043456
  %v30 = vsel %vm28, %v23, 0
  %32 = vmatprep.subr.mxu0 0.0
  %33 = vmatpush1.msra.mxu0 0.0
  %34 = vmatprep.subr.mxu0 0.0
  %35 = vmatpush1.msra.mxu0 0.0
  %36 = vmatprep.subr.mxu0 0.0
  %37 = vmatpush1.msra.mxu0 0.0
  %38 = vmatprep.subr.mxu0 0.0
  %39 = vmatpush1.msra.mxu0 0.0
  %40 = vmatprep.subr.mxu0 0.0
  %41 = vmatpush1.msra.mxu0 0.0
  %42 = vmatprep.subr.mxu0 0.0
  %43 = vmatpush1.msra.mxu0 0.0
  %44 = vmatprep.subr.mxu0 0.0
  %45 = vmatpush1.msra.mxu0 0.0
  %46 = vmatprep.subr.mxu0 0.0
  %47 = vmatpush1.msra.mxu0 0.0
  %48 = vmatprep.subr.mxu0 0.0
  %49 = vmatpush1.msra.mxu0 0.0
  %50 = vmatprep.subr.mxu0 0.0
  %51 = vmatpush1.msra.mxu0 0.0
  %52 = vmatprep.subr.mxu0 0.0
  %53 = vmatpush1.msra.mxu0 0.0
  %54 = vmatprep.subr.mxu0 0.0
  %55 = vmatpush1.msra.mxu0 0.0
  %56 = vmatprep.subr.mxu0 0.0
  %57 = vmatpush1.msra.mxu0 0.0
  %58 = vmatprep.subr.mxu0 0.0
  %59 = vmatpush1.msra.mxu0 0.0
  %60 = vmatprep.subr.mxu0 0.0
  %61 = vmatpush1.msra.mxu0 0.0
  %62 = vmatprep.subr.mxu0 0.0
  %63 = vmatpush1.msra.mxu0 %v30
  %64 = vmatprep.subr.mxu0 0.0
  %65 = vmatpush2.msra.mxu0 0.0
  %66 = vmatprep.subr.mxu0 0.0
  %67 = vmatpush2.msra.mxu0 0.0
  %68 = vmatprep.subr.mxu0 0.0
  %69 = vmatpush2.msra.mxu0 0.0
  %70 = vmatprep.subr.mxu0 0.0
  %71 = vmatpush2.msra.mxu0 0.0
  %72 = vmatprep.subr.mxu0 0.0
  %73 = vmatpush2.msra.mxu0 0.0
  %74 = vmatprep.subr.mxu0 0.0
  %75 = vmatpush2.msra.mxu0 0.0
  %76 = vmatprep.subr.mxu0 0.0
  %77 = vmatpush2.msra.mxu0 0.0
  %78 = vmatprep.subr.mxu0 0.0
  %79 = vmatpush2.msra.mxu0 0.0
  %80 = vmatprep.subr.mxu0 0.0
  %81 = vmatpush2.msra.mxu0 0.0
  %82 = vmatprep.subr.mxu0 0.0
  %83 = vmatpush2.msra.mxu0 0.0
  %84 = vmatprep.subr.mxu0 0.0
  %85 = vmatpush2.msra.mxu0 0.0
  %86 = vmatprep.subr.mxu0 0.0
  %87 = vmatpush2.msra.mxu0 0.0
  %88 = vmatprep.subr.mxu0 0.0
  %89 = vmatpush2.msra.mxu0 0.0
  %90 = vmatprep.subr.mxu0 0.0
  %91 = vmatpush2.msra.mxu0 0.0
  %92 = vmatprep.subr.mxu0 0.0
  %93 = vmatpush2.msra.mxu0 0.0
  %94 = vmatprep.subr.mxu0 0.0
  %95 = vmatpush2.msra.mxu0 0.0
  %96 = vmatprep.mubr.f32.mxu0 0.0
  %97 = vmatmul.mubr.f32.gmra.mxu0 %v26
  %v98 = vpop.f32.mrf.mxu0
  %v99 = vadd.f32 0.0, %v98
  %v100 = vpop.f32.mrf.mxu0
  %101 = vdwg.mxu0
  %v102 = vld [vmem:[%s2] sm:$0x1]
  %v104 = vlaneseq
  %v105 = vshrl.u32 %v104, 7
  %v106 = vsub.s32 0, %v105
  %v107 = vrot.slane %v102, %v106
  %v109 = vadd.f32 %v99, %v107
  %v110 = vtanh.pop %v109
  %112 = vrot.lane.b32.xlu0 %v99, 96
  %v113 = vpop.permute.xlu0 %112
  %vm115 = vcmask 15360
  %116 = vst.msk [vmem:[%s6] sm:$0xff] %vm115, %v113
  %v117 = vld [vmem:[%s3] sm:$0xff]
  %v118 = vld [vmem:[%s3 + $0x8] sm:$0xff]
  %v119 = vld [vmem:[%s3 + $0x10] sm:$0xff]
  %v120 = vld [vmem:[%s3 + $0x18] sm:$0xff]
  %v121 = vld [vmem:[%s4] sm:$0x1]
  %v123 = vlaneseq
  %v124 = vshrl.u32 %v123, 7
  %v125 = vsub.s32 0, %v124
  %v126 = vrot.slane %v121, %v125
  %vm128 = vcmask 261120
  %v130 = vsel %vm128, %v110, 0
  %132 = vmatprep.subr.mxu0 0.0
  %133 = vmatpush1.msra.mxu0 0.0
  %134 = vmatprep.subr.mxu0 0.0
  %135 = vmatpush1.msra.mxu0 0.0
  %136 = vmatprep.subr.mxu0 0.0
  %137 = vmatpush1.msra.mxu0 0.0
  %138 = vmatprep.subr.mxu0 0.0
  %139 = vmatpush1.msra.mxu0 0.0
  %140 = vmatprep.subr.mxu0 0.0
  %141 = vmatpush1.msra.mxu0 0.0
  %142 = vmatprep.subr.mxu0 0.0
  %143 = vmatpush1.msra.mxu0 0.0
  %144 = vmatprep.subr.mxu0 0.0
  %145 = vmatpush1.msra.mxu0 0.0
  %146 = vmatprep.subr.mxu0 0.0
  %147 = vmatpush1.msra.mxu0 0.0
  %148 = vmatprep.subr.mxu0 0.0
  %149 = vmatpush1.msra.mxu0 0.0
  %150 = vmatprep.subr.mxu0 0.0
  %151 = vmatpush1.msra.mxu0 0.0
  %152 = vmatprep.subr.mxu0 0.0
  %153 = vmatpush1.msra.mxu0 0.0
  %154 = vmatprep.subr.mxu0 0.0
  %155 = vmatpush1.msra.mxu0 0.0
  %156 = vmatprep.subr.mxu0 0.0
  %157 = vmatpush1.msra.mxu0 %v120
  %158 = vmatprep.subr.mxu0 0.0
  %159 = vmatpush1.msra.mxu0 %v119
  %160 = vmatprep.subr.mxu0 0.0
  %161 = vmatpush1.msra.mxu0 %v118
  %162 = vmatprep.subr.mxu0 0.0
  %163 = vmatpush1.msra.mxu0 %v117
  %164 = vmatprep.subr.mxu0 0.0
  %165 = vmatpush2.msra.mxu0 0.0
  %166 = vmatprep.subr.mxu0 0.0
  %167 = vmatpush2.msra.mxu0 0.0
  %168 = vmatprep.subr.mxu0 0.0
  %169 = vmatpush2.msra.mxu0 0.0
  %170 = vmatprep.subr.mxu0 0.0
  %171 = vmatpush2.msra.mxu0 0.0
  %172 = vmatprep.subr.mxu0 0.0
  %173 = vmatpush2.msra.mxu0 0.0
  %174 = vmatprep.subr.mxu0 0.0
  %175 = vmatpush2.msra.mxu0 0.0
  %176 = vmatprep.subr.mxu0 0.0
  %177 = vmatpush2.msra.mxu0 0.0
  %178 = vmatprep.subr.mxu0 0.0
  %179 = vmatpush2.msra.mxu0 0.0
  %180 = vmatprep.subr.mxu0 0.0
  %181 = vmatpush2.msra.mxu0 0.0
  %182 = vmatprep.subr.mxu0 0.0
  %183 = vmatpush2.msra.mxu0 0.0
  %184 = vmatprep.subr.mxu0 0.0
  %185 = vmatpush2.msra.mxu0 0.0
  %186 = vmatprep.subr.mxu0 0.0
  %187 = vmatpush2.msra.mxu0 0.0
  %188 = vmatprep.subr.mxu0 0.0
  %189 = vmatpush2.msra.mxu0 0.0
  %190 = vmatprep.subr.mxu0 0.0
  %191 = vmatpush2.msra.mxu0 0.0
  %192 = vmatprep.subr.mxu0 0.0
  %193 = vmatpush2.msra.mxu0 0.0
  %194 = vmatprep.subr.mxu0 0.0
  %195 = vmatpush2.msra.mxu0 0.0
  %196 = vmatprep.mubr.f32.mxu0 0.0
  %197 = vmatmul.mubr.f32.gmra.mxu0 %v130
  %v198 = vpop.f32.mrf.mxu0
  %v199 = vadd.f32 %v126, %v198
  %v200 = vpop.f32.mrf.mxu0
  %201 = vdwg.mxu0
  %v202 = vtanh.pop %v199
  %203 = vst.msk [vmem:[%s5] sm:$0xff] %vm115, %v202
  // Predicated region
  $region22: #{neural_lyapunov_controller.1} parent=0 // pred_check
    _
  $region23: #{neural_lyapunov_controller.1} parent=0 // pred_check_branch
    %205 = sbr.rel (0) target = $region25
  $region24: #{neural_lyapunov_controller.1} parent=0 // pred_region
    _
  $region25: #{neural_lyapunov_controller.1} parent=0 // pred_fallthru
    _
  // Predicated region
  $region26: #{neural_lyapunov_controller.1} parent=0 // pred_check
    _
  $region27: #{neural_lyapunov_controller.1} parent=0 // pred_check_branch
    %207 = sbr.rel (0) target = $region29
  $region28: #{neural_lyapunov_controller.1} parent=0 // pred_region
    _
  $region29: #{neural_lyapunov_controller.1} parent=0 // pred_fallthru
    _
  // Predicated region
  $region30: #{neural_lyapunov_controller.1} parent=0 // pred_check
    _
  $region31: #{neural_lyapunov_controller.1} parent=0 // pred_check_branch
    %209 = sbr.rel (0) target = $region33
  $region32: #{neural_lyapunov_controller.1} parent=0 // pred_region
    _
  $region33: #{neural_lyapunov_controller.1} parent=0 // pred_fallthru
    _
  // Predicated region
  $region34: #{neural_lyapunov_controller.1} parent=0 // pred_check
    _
  $region35: #{neural_lyapunov_controller.1} parent=0 // pred_check_branch
    %211 = sbr.rel (0) target = $region37
  $region36: #{neural_lyapunov_controller.1} parent=0 // pred_region
    _
  $region37: #{neural_lyapunov_controller.1} parent=0 // pred_fallthru
    _

</llo_original>
